<compile_context>
chip_gen: v5e
topology: v5e:2x2
jax: 0.10.0
libtpu: 0.0.40
codegen_flags: <defaults>
</compile_context>

<pallas_src>
import jax
import jax.numpy as jnp
import numpy as np
from jax.experimental import pallas as pl
from jax.experimental.pallas import tpu as pltpu

# ----- "args" of the SiameseCNN module (small synthetic config) -----
VOCAB = 32            # args.vocab_size
EMB = 16              # args.embedding_size
MAX_LEN = 16          # args.max_len
FILTERS = 8           # args.filters
KERNEL_SIZES = (2, 3) # args.kernel_size_list
NUM_CLASS = 3         # args.num_class
BATCH = 2

LANES = 128
NG = len(KERNEL_SIZES)
FT = FILTERS * NG           # packed conv-feature width (both kernel sizes)
KMAX = max(KERNEL_SIZES)    # number of distinct conv taps
FC1, FC2 = 64, 32
NEG_INF = -1e30

VMEM_SPEC = pl.BlockSpec(memory_space=pltpu.MemorySpace.VMEM)


# ----- weight-slab layout (row offsets; every region 8-row aligned) -----
def _r8(n):
    return ((n + 7) // 8) * 8

_next = [0]
def _region(nrows):
    off = _next[0]
    _next[0] += _r8(nrows)
    return off

OFF_TAP  = _region(KMAX * VOCAB)  # fused (embedding @ conv_w[k]) tables, per tap
OFF_MASK = _region(MAX_LEN)       # additive -inf mask for invalid conv positions
OFF_CB   = _region(1)             # packed conv biases
OFF_G    = _region(LANES)         # lane-group indicator (cos / euclidean sums)
OFF_W1S  = _region(LANES)         # w1 sub-rows (mul-rows folded in)
OFF_W1C  = _region(LANES)         # w1 cosine rows
OFF_W1E  = _region(LANES)         # w1 euclidean rows
OFF_B1   = _region(1)
OFF_W2   = _region(LANES)
OFF_B2   = _region(1)
OFF_W3   = _region(LANES)
OFF_B3   = _region(1)
SLAB_ROWS = _next[0]              # = 912


# --------------------------------------------------------------------------
# Fused kernel.
#   idx_ref : (KMAX, 2B*L, 1) int32  -- per-tap shifted token ids (x1 rows, x2 rows)
#   w_ref   : (SLAB_ROWS, 128) f32   -- packed weight slab
#   out_ref : (B, 128) f32           -- lanes 0:C logit, C:2C prob
# --------------------------------------------------------------------------
def _siamese_fused_kernel(idx_ref, w_ref, out_ref):
    n_rows = idx_ref.shape[1]           # 2B * L
    B = out_ref.shape[0]

    # ---- embedding gather fused with conv taps: 2-D one-hot matmuls (MXU) ----
    lane_iota = jax.lax.broadcasted_iota(jnp.int32, (n_rows, VOCAB), 1)
    y = None
    for k in range(KMAX):
        onehot = (lane_iota == idx_ref[k]).astype(jnp.float32)           # (2B*L, V)
        tap = w_ref[OFF_TAP + k * VOCAB: OFF_TAP + (k + 1) * VOCAB, :]   # (V, 128)
        z = jnp.dot(onehot, tap, preferred_element_type=jnp.float32)     # (2B*L, 128)
        y = z if y is None else y + z

    # ---- masked global max-pool over positions, THEN bias + ReLU --------------
    mask = w_ref[OFF_MASK: OFF_MASK + MAX_LEN, :]                        # (L, 128)
    y3 = y.reshape(2 * B, MAX_LEN, LANES) + mask[None, :, :]
    pooled = jnp.max(y3, axis=1)                                         # (2B, 128)
    feats = jnp.maximum(pooled + w_ref[OFF_CB: OFF_CB + 1, :], 0.0)      # (2B, 128)

    # ---- siamese feature block (no concatenation; group sums via MXU) --------
    a = feats[:B, :]
    b = feats[B:, :]
    diff = a - b
    sub = jnp.abs(diff)         # NOTE: also serves as "mul" (reference bug kept)
    G = w_ref[OFF_G: OFF_G + LANES, :]
    dot_g = jnp.dot(a * b, G, preferred_element_type=jnp.float32)
    na2 = jnp.dot(a * a, G, preferred_element_type=jnp.float32)
    nb2 = jnp.dot(b * b, G, preferred_element_type=jnp.float32)
    d2 = jnp.dot(diff * diff, G, preferred_element_type=jnp.float32)
    # dot/max(|a||b|, 1e-8) == dot * rsqrt(max(|a|^2|b|^2, 1e-16))  (EUP rsqrt)
    cos = dot_g * jax.lax.rsqrt(jnp.maximum(na2 * nb2, 1e-16))
    euc = jnp.sqrt(d2)

    # ---- MLP head: feat @ w1 decomposed into pre-split weight blocks ---------
    h = (jnp.dot(sub, w_ref[OFF_W1S: OFF_W1S + LANES, :],
                 preferred_element_type=jnp.float32)
         + jnp.dot(cos, w_ref[OFF_W1C: OFF_W1C + LANES, :],
                   preferred_element_type=jnp.float32)
         + jnp.dot(euc, w_ref[OFF_W1E: OFF_W1E + LANES, :],
                   preferred_element_type=jnp.float32)
         + w_ref[OFF_B1: OFF_B1 + 1, :])
    h = jnp.maximum(h, 0.0)
    h = jnp.maximum(jnp.dot(h, w_ref[OFF_W2: OFF_W2 + LANES, :],
                            preferred_element_type=jnp.float32)
                    + w_ref[OFF_B2: OFF_B2 + 1, :], 0.0)
    logit = (jnp.dot(h, w_ref[OFF_W3: OFF_W3 + LANES, :],
                     preferred_element_type=jnp.float32)
             + w_ref[OFF_B3: OFF_B3 + 1, :])[:, :NUM_CLASS]

    # ---- softmax (EUP reciprocal + one Newton refinement) --------------------
    m = jnp.max(logit, axis=1, keepdims=True)
    ex = jnp.exp(logit - m)
    s = jnp.sum(ex, axis=1, keepdims=True)
    r = pl.reciprocal(s, approx=True)
    r = r * (2.0 - s * r)
    prob = ex * r

    # ---- lane-dense (B, 128) output block ------------------------------------
    out_ref[...] = jnp.zeros_like(out_ref)
    out_ref[:, :NUM_CLASS] = logit
    out_ref[:, NUM_CLASS:2 * NUM_CLASS] = prob


# --------------------------------------------------------------------------
# Wrapper-side weight packing: one lane-dense f32 slab, built once per params.
# --------------------------------------------------------------------------
def pack_params(params):
    slab = jnp.zeros((SLAB_ROWS, LANES), jnp.float32)
    emb = params['embedding'].astype(jnp.float32)
    # Fused embedding x conv-tap tables: M_k[:, group i] = emb @ conv_w[i][k].
    for k in range(KMAX):
        for i, ksz in enumerate(KERNEL_SIZES):
            if k < ksz:
                tap = emb @ params['conv_w'][i][k]                       # (V, F)
                slab = slab.at[OFF_TAP + k * VOCAB: OFF_TAP + (k + 1) * VOCAB,
                               i * FILTERS:(i + 1) * FILTERS].set(tap)
    for i, ksz in enumerate(KERNEL_SIZES):
        lout = MAX_LEN - ksz + 1
        slab = slab.at[OFF_MASK + lout: OFF_MASK + MAX_LEN,
                       i * FILTERS:(i + 1) * FILTERS].set(NEG_INF)
        slab = slab.at[OFF_CB, i * FILTERS:(i + 1) * FILTERS].set(
            params['conv_b'][i][0])
        slab = slab.at[OFF_G + i * FILTERS: OFF_G + (i + 1) * FILTERS, i].set(1.0)
    w1 = params['w1']
    # Fold "mul" rows into "sub" rows (mul == sub in the reference semantics).
    slab = slab.at[OFF_W1S: OFF_W1S + FT, :FC1].set(w1[:FT] + w1[FT:2 * FT])
    slab = slab.at[OFF_W1C: OFF_W1C + NG, :FC1].set(w1[2 * FT: 2 * FT + NG])
    slab = slab.at[OFF_W1E: OFF_W1E + NG, :FC1].set(w1[2 * FT + NG: 2 * FT + 2 * NG])
    slab = slab.at[OFF_B1, :FC1].set(params['b1'][0])
    slab = slab.at[OFF_W2: OFF_W2 + FC1, :FC2].set(params['w2'])
    slab = slab.at[OFF_B2, :FC2].set(params['b2'][0])
    slab = slab.at[OFF_W3: OFF_W3 + FC2, :NUM_CLASS].set(params['w3'])
    slab = slab.at[OFF_B3, :NUM_CLASS].set(params['b3'][0])
    return slab


@jax.jit
def siamese_cnn_forward(slab, x1, x2):
    B, L = x1.shape
    ids = jnp.concatenate([x1, x2], axis=0).astype(jnp.int32)            # (2B, L)
    # Per-tap shifted token ids; positions past lout are masked inside the kernel.
    idx = jnp.stack([jnp.roll(ids, -k, axis=1).reshape(2 * B * L, 1)
                     for k in range(KMAX)], axis=0)                      # (KMAX, 2B*L, 1)
    out = pl.pallas_call(
        _siamese_fused_kernel,
        out_shape=jax.ShapeDtypeStruct((B, LANES), jnp.float32),
        in_specs=[VMEM_SPEC, VMEM_SPEC],
        out_specs=VMEM_SPEC,
    )(idx, slab)
    return out[:, :NUM_CLASS], out[:, NUM_CLASS:2 * NUM_CLASS]


# --------------------------------------------------------------------------
# Pure-JAX reference (same math as the PyTorch module, eval mode).
# --------------------------------------------------------------------------
def reference_forward(params, x1, x2):
    emb_w = params['embedding']
    e1, e2 = emb_w[x1], emb_w[x2]

    def conv_feat(e, w, b, ksz):
        L = e.shape[1]
        lout = L - ksz + 1
        acc = jnp.zeros((e.shape[0], lout, w.shape[2]), jnp.float32)
        for k in range(ksz):
            acc = acc + jnp.einsum('ble,ef->blf', e[:, k:k + lout, :], w[k])
        acc = jnp.maximum(acc + b[None, :, :], 0.0)
        return jnp.max(acc, axis=1)

    subs, muls, coss, eucs = [], [], [], []
    for i, ksz in enumerate(KERNEL_SIZES):
        a = conv_feat(e1, params['conv_w'][i], params['conv_b'][i], ksz)
        b = conv_feat(e2, params['conv_w'][i], params['conv_b'][i], ksz)
        sub = jnp.abs(a - b)
        subs.append(sub)
        muls.append(sub)  # reference bug reproduced
        dot = jnp.sum(a * b, -1, keepdims=True)
        na = jnp.sqrt(jnp.sum(a * a, -1, keepdims=True))
        nb = jnp.sqrt(jnp.sum(b * b, -1, keepdims=True))
        coss.append(dot / jnp.maximum(na * nb, 1e-8))
        eucs.append(jnp.sqrt(jnp.sum((a - b) ** 2, -1, keepdims=True)))
    out = jnp.concatenate(subs + muls + coss + eucs, axis=-1)
    h = jnp.maximum(out @ params['w1'] + params['b1'], 0.0)
    h = jnp.maximum(h @ params['w2'] + params['b2'], 0.0)
    logit = h @ params['w3'] + params['b3']
    prob = jax.nn.softmax(logit, axis=1)
    return logit, prob


def init_params(key):
    ks = jax.random.split(key, 16)
    D = (2 * FILTERS + 2) * len(KERNEL_SIZES)
    p = {
        'embedding': jax.random.normal(ks[0], (VOCAB, EMB), jnp.float32) * 0.1,
        'conv_w': [], 'conv_b': [],
        'w1': jax.random.normal(ks[8], (D, FC1), jnp.float32) * 0.1,
        'b1': jax.random.normal(ks[9], (1, FC1), jnp.float32) * 0.1,
        'w2': jax.random.normal(ks[10], (FC1, FC2), jnp.float32) * 0.1,
        'b2': jax.random.normal(ks[11], (1, FC2), jnp.float32) * 0.1,
        'w3': jax.random.normal(ks[12], (FC2, NUM_CLASS), jnp.float32) * 0.1,
        'b3': jax.random.normal(ks[13], (1, NUM_CLASS), jnp.float32) * 0.1,
    }
    for i, ksz in enumerate(KERNEL_SIZES):
        p['conv_w'].append(
            jax.random.normal(ks[1 + i], (ksz, EMB, FILTERS), jnp.float32) * 0.1)
        p['conv_b'].append(
            jax.random.normal(ks[4 + i], (1, FILTERS), jnp.float32) * 0.1)
    return p


if __name__ == "__main__":
    key = jax.random.PRNGKey(0)
    kp, kx1, kx2 = jax.random.split(key, 3)
    params = init_params(kp)
    x1 = jax.random.randint(kx1, (BATCH, MAX_LEN), 0, VOCAB, dtype=jnp.int32)
    x2 = jax.random.randint(kx2, (BATCH, MAX_LEN), 0, VOCAB, dtype=jnp.int32)

    slab = pack_params(params)                 # once per params, outside the forward
    logit, prob = siamese_cnn_forward(slab, x1, x2)
    jax.block_until_ready((logit, prob))

    ref_logit, ref_prob = reference_forward(params, x1, x2)
    np.testing.assert_allclose(np.asarray(logit), np.asarray(ref_logit),
                               rtol=1e-3, atol=1e-3)
    np.testing.assert_allclose(np.asarray(prob), np.asarray(ref_prob),
                               rtol=1e-3, atol=1e-3)
    print("KERNEL_OK")
</pallas_src>

<mosaic_0001>
module attributes {stable_mosaic.version = 11 : i64} {
  func.func @_siamese_fused_kernel(%arg0: memref<3x64x1xi32, #tpu.memory_space<vmem>>, %arg1: memref<912x128xf32, #tpu.memory_space<vmem>>, %arg2: memref<2x128xf32, #tpu.memory_space<vmem>>) attributes {dimension_semantics = [], scalar_prefetch = 0 : i64, scratch_operands = 0 : i64, tpu.core_type = #tpu.core_type<tc>} {
    %0 = tpu.iota {dimensions = array<i32: 1>} : vector<64x32xi32>
    %c0 = arith.constant 0 : index
    %c0_0 = arith.constant 0 : index
    %c0_1 = arith.constant 0 : index
    %1 = vector.load %arg0[%c0, %c0_0, %c0_1] : memref<3x64x1xi32, #tpu.memory_space<vmem>>, vector<1x64x1xi32>
    %2 = vector.shape_cast %1 : vector<1x64x1xi32> to vector<64x1xi32>
    %3 = vector.broadcast %2 : vector<64x1xi32> to vector<64x32xi32>
    %4 = arith.cmpi eq, %0, %3 : vector<64x32xi32>
    %5 = arith.extui %4 : vector<64x32xi1> to vector<64x32xi32>
    %6 = arith.sitofp %5 : vector<64x32xi32> to vector<64x32xf32>
    %c0_2 = arith.constant 0 : index
    %c0_3 = arith.constant 0 : index
    %7 = vector.load %arg1[%c0_2, %c0_3] : memref<912x128xf32, #tpu.memory_space<vmem>>, vector<32x128xf32>
    %cst = arith.constant dense<0.000000e+00> : vector<64x128xf32>
    %8 = tpu.matmul %6, %7, %cst {dimension_numbers = #tpu.dot_dimension_numbers<[1], [0], [0], [1], [0, 0, 1, 1], [], []>} : vector<64x32xf32>, vector<32x128xf32>, vector<64x128xf32> -> vector<64x128xf32>
    %c1 = arith.constant 1 : index
    %c0_4 = arith.constant 0 : index
    %c0_5 = arith.constant 0 : index
    %9 = vector.load %arg0[%c1, %c0_4, %c0_5] : memref<3x64x1xi32, #tpu.memory_space<vmem>>, vector<1x64x1xi32>
    %10 = vector.shape_cast %9 : vector<1x64x1xi32> to vector<64x1xi32>
    %11 = vector.broadcast %10 : vector<64x1xi32> to vector<64x32xi32>
    %12 = arith.cmpi eq, %0, %11 : vector<64x32xi32>
    %13 = arith.extui %12 : vector<64x32xi1> to vector<64x32xi32>
    %14 = arith.sitofp %13 : vector<64x32xi32> to vector<64x32xf32>
    %c32 = arith.constant 32 : index
    %c0_6 = arith.constant 0 : index
    %15 = vector.load %arg1[%c32, %c0_6] : memref<912x128xf32, #tpu.memory_space<vmem>>, vector<32x128xf32>
    %cst_7 = arith.constant dense<0.000000e+00> : vector<64x128xf32>
    %16 = tpu.matmul %14, %15, %cst_7 {dimension_numbers = #tpu.dot_dimension_numbers<[1], [0], [0], [1], [0, 0, 1, 1], [], []>} : vector<64x32xf32>, vector<32x128xf32>, vector<64x128xf32> -> vector<64x128xf32>
    %17 = arith.addf %8, %16 : vector<64x128xf32>
    %c2 = arith.constant 2 : index
    %c0_8 = arith.constant 0 : index
    %c0_9 = arith.constant 0 : index
    %18 = vector.load %arg0[%c2, %c0_8, %c0_9] : memref<3x64x1xi32, #tpu.memory_space<vmem>>, vector<1x64x1xi32>
    %19 = vector.shape_cast %18 : vector<1x64x1xi32> to vector<64x1xi32>
    %20 = vector.broadcast %19 : vector<64x1xi32> to vector<64x32xi32>
    %21 = arith.cmpi eq, %0, %20 : vector<64x32xi32>
    %22 = arith.extui %21 : vector<64x32xi1> to vector<64x32xi32>
    %23 = arith.sitofp %22 : vector<64x32xi32> to vector<64x32xf32>
    %c64 = arith.constant 64 : index
    %c0_10 = arith.constant 0 : index
    %24 = vector.load %arg1[%c64, %c0_10] : memref<912x128xf32, #tpu.memory_space<vmem>>, vector<32x128xf32>
    %cst_11 = arith.constant dense<0.000000e+00> : vector<64x128xf32>
    %25 = tpu.matmul %23, %24, %cst_11 {dimension_numbers = #tpu.dot_dimension_numbers<[1], [0], [0], [1], [0, 0, 1, 1], [], []>} : vector<64x32xf32>, vector<32x128xf32>, vector<64x128xf32> -> vector<64x128xf32>
    %26 = arith.addf %17, %25 : vector<64x128xf32>
    %c96 = arith.constant 96 : index
    %c0_12 = arith.constant 0 : index
    %27 = vector.load %arg1[%c96, %c0_12] : memref<912x128xf32, #tpu.memory_space<vmem>>, vector<16x128xf32>
    %28 = vector.shape_cast %26 : vector<64x128xf32> to vector<4x16x128xf32>
    %29 = vector.shape_cast %27 : vector<16x128xf32> to vector<1x16x128xf32>
    %30 = vector.broadcast %29 : vector<1x16x128xf32> to vector<4x16x128xf32>
    %31 = arith.addf %28, %30 : vector<4x16x128xf32>
    %cst_13 = arith.constant dense<0xFF800000> : vector<4x128xf32>
    %32 = vector.multi_reduction <maximumf>, %31, %cst_13 [1] : vector<4x16x128xf32> to vector<4x128xf32>
    %c112 = arith.constant 112 : index
    %c0_14 = arith.constant 0 : index
    %33 = vector.load %arg1[%c112, %c0_14] : memref<912x128xf32, #tpu.memory_space<vmem>>, vector<1x128xf32>
    %34 = vector.broadcast %33 : vector<1x128xf32> to vector<4x128xf32>
    %35 = arith.addf %32, %34 : vector<4x128xf32>
    %cst_15 = arith.constant 0.000000e+00 : f32
    %36 = vector.broadcast %cst_15 : f32 to vector<4x128xf32>
    %37 = arith.maximumf %35, %36 : vector<4x128xf32>
    %38 = vector.extract_strided_slice %37 {offsets = [0, 0], sizes = [2, 128], strides = [1, 1]} : vector<4x128xf32> to vector<2x128xf32>
    %39 = vector.extract_strided_slice %37 {offsets = [2, 0], sizes = [2, 128], strides = [1, 1]} : vector<4x128xf32> to vector<2x128xf32>
    %40 = arith.subf %38, %39 : vector<2x128xf32>
    %41 = math.absf %40 : vector<2x128xf32>
    %c120 = arith.constant 120 : index
    %c0_16 = arith.constant 0 : index
    %42 = vector.load %arg1[%c120, %c0_16] : memref<912x128xf32, #tpu.memory_space<vmem>>, vector<128x128xf32>
    %43 = arith.mulf %38, %39 : vector<2x128xf32>
    %cst_17 = arith.constant dense<0.000000e+00> : vector<2x128xf32>
    %44 = tpu.matmul %43, %42, %cst_17 {dimension_numbers = #tpu.dot_dimension_numbers<[1], [0], [0], [1], [0, 0, 1, 1], [], []>} : vector<2x128xf32>, vector<128x128xf32>, vector<2x128xf32> -> vector<2x128xf32>
    %45 = arith.mulf %38, %38 : vector<2x128xf32>
    %cst_18 = arith.constant dense<0.000000e+00> : vector<2x128xf32>
    %46 = tpu.matmul %45, %42, %cst_18 {dimension_numbers = #tpu.dot_dimension_numbers<[1], [0], [0], [1], [0, 0, 1, 1], [], []>} : vector<2x128xf32>, vector<128x128xf32>, vector<2x128xf32> -> vector<2x128xf32>
    %47 = arith.mulf %39, %39 : vector<2x128xf32>
    %cst_19 = arith.constant dense<0.000000e+00> : vector<2x128xf32>
    %48 = tpu.matmul %47, %42, %cst_19 {dimension_numbers = #tpu.dot_dimension_numbers<[1], [0], [0], [1], [0, 0, 1, 1], [], []>} : vector<2x128xf32>, vector<128x128xf32>, vector<2x128xf32> -> vector<2x128xf32>
    %49 = arith.mulf %40, %40 : vector<2x128xf32>
    %cst_20 = arith.constant dense<0.000000e+00> : vector<2x128xf32>
    %50 = tpu.matmul %49, %42, %cst_20 {dimension_numbers = #tpu.dot_dimension_numbers<[1], [0], [0], [1], [0, 0, 1, 1], [], []>} : vector<2x128xf32>, vector<128x128xf32>, vector<2x128xf32> -> vector<2x128xf32>
    %51 = arith.mulf %46, %48 : vector<2x128xf32>
    %cst_21 = arith.constant 1.000000e-16 : f32
    %52 = vector.broadcast %cst_21 : f32 to vector<2x128xf32>
    %53 = arith.maximumf %51, %52 : vector<2x128xf32>
    %54 = math.rsqrt %53 : vector<2x128xf32>
    %55 = arith.mulf %44, %54 : vector<2x128xf32>
    %56 = math.sqrt %50 : vector<2x128xf32>
    %c248 = arith.constant 248 : index
    %c0_22 = arith.constant 0 : index
    %57 = vector.load %arg1[%c248, %c0_22] : memref<912x128xf32, #tpu.memory_space<vmem>>, vector<128x128xf32>
    %cst_23 = arith.constant dense<0.000000e+00> : vector<2x128xf32>
    %58 = tpu.matmul %41, %57, %cst_23 {dimension_numbers = #tpu.dot_dimension_numbers<[1], [0], [0], [1], [0, 0, 1, 1], [], []>} : vector<2x128xf32>, vector<128x128xf32>, vector<2x128xf32> -> vector<2x128xf32>
    %c376 = arith.constant 376 : index
    %c0_24 = arith.constant 0 : index
    %59 = vector.load %arg1[%c376, %c0_24] : memref<912x128xf32, #tpu.memory_space<vmem>>, vector<128x128xf32>
    %cst_25 = arith.constant dense<0.000000e+00> : vector<2x128xf32>
    %60 = tpu.matmul %55, %59, %cst_25 {dimension_numbers = #tpu.dot_dimension_numbers<[1], [0], [0], [1], [0, 0, 1, 1], [], []>} : vector<2x128xf32>, vector<128x128xf32>, vector<2x128xf32> -> vector<2x128xf32>
    %61 = arith.addf %58, %60 : vector<2x128xf32>
    %c504 = arith.constant 504 : index
    %c0_26 = arith.constant 0 : index
    %62 = vector.load %arg1[%c504, %c0_26] : memref<912x128xf32, #tpu.memory_space<vmem>>, vector<128x128xf32>
    %cst_27 = arith.constant dense<0.000000e+00> : vector<2x128xf32>
    %63 = tpu.matmul %56, %62, %cst_27 {dimension_numbers = #tpu.dot_dimension_numbers<[1], [0], [0], [1], [0, 0, 1, 1], [], []>} : vector<2x128xf32>, vector<128x128xf32>, vector<2x128xf32> -> vector<2x128xf32>
    %64 = arith.addf %61, %63 : vector<2x128xf32>
    %c632 = arith.constant 632 : index
    %c0_28 = arith.constant 0 : index
    %65 = vector.load %arg1[%c632, %c0_28] : memref<912x128xf32, #tpu.memory_space<vmem>>, vector<1x128xf32>
    %66 = vector.broadcast %65 : vector<1x128xf32> to vector<2x128xf32>
    %67 = arith.addf %64, %66 : vector<2x128xf32>
    %cst_29 = arith.constant 0.000000e+00 : f32
    %68 = vector.broadcast %cst_29 : f32 to vector<2x128xf32>
    %69 = arith.maximumf %67, %68 : vector<2x128xf32>
    %c640 = arith.constant 640 : index
    %c0_30 = arith.constant 0 : index
    %70 = vector.load %arg1[%c640, %c0_30] : memref<912x128xf32, #tpu.memory_space<vmem>>, vector<128x128xf32>
    %cst_31 = arith.constant dense<0.000000e+00> : vector<2x128xf32>
    %71 = tpu.matmul %69, %70, %cst_31 {dimension_numbers = #tpu.dot_dimension_numbers<[1], [0], [0], [1], [0, 0, 1, 1], [], []>} : vector<2x128xf32>, vector<128x128xf32>, vector<2x128xf32> -> vector<2x128xf32>
    %c768 = arith.constant 768 : index
    %c0_32 = arith.constant 0 : index
    %72 = vector.load %arg1[%c768, %c0_32] : memref<912x128xf32, #tpu.memory_space<vmem>>, vector<1x128xf32>
    %73 = vector.broadcast %72 : vector<1x128xf32> to vector<2x128xf32>
    %74 = arith.addf %71, %73 : vector<2x128xf32>
    %cst_33 = arith.constant 0.000000e+00 : f32
    %75 = vector.broadcast %cst_33 : f32 to vector<2x128xf32>
    %76 = arith.maximumf %74, %75 : vector<2x128xf32>
    %c776 = arith.constant 776 : index
    %c0_34 = arith.constant 0 : index
    %77 = vector.load %arg1[%c776, %c0_34] : memref<912x128xf32, #tpu.memory_space<vmem>>, vector<128x128xf32>
    %cst_35 = arith.constant dense<0.000000e+00> : vector<2x128xf32>
    %78 = tpu.matmul %76, %77, %cst_35 {dimension_numbers = #tpu.dot_dimension_numbers<[1], [0], [0], [1], [0, 0, 1, 1], [], []>} : vector<2x128xf32>, vector<128x128xf32>, vector<2x128xf32> -> vector<2x128xf32>
    %c904 = arith.constant 904 : index
    %c0_36 = arith.constant 0 : index
    %79 = vector.load %arg1[%c904, %c0_36] : memref<912x128xf32, #tpu.memory_space<vmem>>, vector<1x128xf32>
    %80 = vector.broadcast %79 : vector<1x128xf32> to vector<2x128xf32>
    %81 = arith.addf %78, %80 : vector<2x128xf32>
    %82 = vector.extract_strided_slice %81 {offsets = [0, 0], sizes = [2, 3], strides = [1, 1]} : vector<2x128xf32> to vector<2x3xf32>
    %cst_37 = arith.constant dense<0xFF800000> : vector<2xf32>
    %83 = vector.multi_reduction <maximumf>, %82, %cst_37 [1] : vector<2x3xf32> to vector<2xf32>
    %84 = vector.shape_cast %83 : vector<2xf32> to vector<2x1xf32>
    %85 = vector.broadcast %84 : vector<2x1xf32> to vector<2x3xf32>
    %86 = arith.subf %82, %85 : vector<2x3xf32>
    %87 = math.exp %86 : vector<2x3xf32>
    %cst_38 = arith.constant dense<0.000000e+00> : vector<2xf32>
    %88 = vector.multi_reduction <add>, %87, %cst_38 [1] : vector<2x3xf32> to vector<2xf32>
    %89 = vector.shape_cast %88 : vector<2xf32> to vector<2x1xf32>
    %90 = tpu.reciprocal %89 {approx = true} : vector<2x1xf32> -> vector<2x1xf32>
    %91 = arith.mulf %89, %90 : vector<2x1xf32>
    %cst_39 = arith.constant 2.000000e+00 : f32
    %92 = vector.broadcast %cst_39 : f32 to vector<2x1xf32>
    %93 = arith.subf %92, %91 : vector<2x1xf32>
    %94 = arith.mulf %90, %93 : vector<2x1xf32>
    %95 = vector.broadcast %94 : vector<2x1xf32> to vector<2x3xf32>
    %96 = arith.mulf %87, %95 : vector<2x3xf32>
    %cst_40 = arith.constant 0.000000e+00 : f32
    %97 = vector.broadcast %cst_40 : f32 to vector<2x128xf32>
    %c0_41 = arith.constant 0 : index
    %c0_42 = arith.constant 0 : index
    %98 = vector.load %arg2[%c0_41, %c0_42] : memref<2x128xf32, #tpu.memory_space<vmem>>, vector<2x128xf32>
    tpu.vector_store %arg2[%c0_41, %c0_42], %97 {strides = array<i32>} : memref<2x128xf32, #tpu.memory_space<vmem>>, vector<2x128xf32>,
    %c0_43 = arith.constant 0 : index
    %c0_44 = arith.constant 0 : index
    %99 = vector.load %arg2[%c0_43, %c0_44] : memref<2x128xf32, #tpu.memory_space<vmem>>, vector<2x3xf32>
    tpu.vector_store %arg2[%c0_43, %c0_44], %82 {strides = array<i32>} : memref<2x128xf32, #tpu.memory_space<vmem>>, vector<2x3xf32>,
    %c0_45 = arith.constant 0 : index
    %c3 = arith.constant 3 : index
    %100 = vector.load %arg2[%c0_45, %c3] : memref<2x128xf32, #tpu.memory_space<vmem>>, vector<2x3xf32>
    tpu.vector_store %arg2[%c0_45, %c3], %96 {strides = array<i32>} : memref<2x128xf32, #tpu.memory_space<vmem>>, vector<2x3xf32>,
    return
  }
}

</mosaic_0001>

<llo_original>
// kernel: siamese_cnn_forward.1
$region0: #{siamese_cnn_forward.1}
  #allocation0 [shape = 'u32[]', space=smem, size = 0x4, offset = 0x4, fixed_abs, tag = 'smem constant byte address 0x4 - core index']
  #allocation1 [shape = 'u32[72,128]{1,0:T(1,128)}', space=vmem, size = 0x9000, scoped, tag = 'internal scratch']
  %s0 = inlined_call_operand.vmem [shape: s32[3,64,1], index: 0, kind: input, shape index: {}]
  %s1 = inlined_call_operand.hbm [shape: f32[912,128], index: 1, kind: input, shape index: {}]
  %s2 = inlined_call_operand.vmem [shape: f32[2,128], index: 2, kind: output, shape index: {}]
  %s3 = sld [smem:[#allocation0]]
  $region22: #{siamese_cnn_forward.1} parent=0
    _
  %s5 = ssub.s32 1, %s3
  %s6 = scalar_select 0, %s5, %s3
  $region1: #{siamese_cnn_forward.1} parent=0
    #allocation2 [shape = 'u8[466944]{0}', space=vmem, size = 0x72000, scoped, tag = 'input window, operand 1, single buffered']
    #allocation3 [shape = 's32[1]{0}', space=sflag, size = 0x4, scoped, tag = 'scoped memory for siamese_cnn_forward.1']
    %7 = vsyncpa [#allocation3], 0
    // Predicated region
    $region2: #{siamese_cnn_forward.1} parent=1 // pred_check
      _
    $region3: #{siamese_cnn_forward.1} parent=1 // pred_check_branch
      %9 = sbr.rel (0) target = $region5
    $region4: #{siamese_cnn_forward.1} parent=1 // pred_region
      _
    $region5: #{siamese_cnn_forward.1} parent=1 // pred_fallthru
      _
    // Predicated region
    $region6: #{siamese_cnn_forward.1} parent=1 // pred_check
      _
    $region7: #{siamese_cnn_forward.1} parent=1 // pred_check_branch
      %11 = sbr.rel (0) target = $region9
    $region8: #{siamese_cnn_forward.1} parent=1 // pred_region
      %13 = vsyncadd [#allocation3], 0
      %s14 = sshll.u32 %s1, 4
      %s15 = int_to_ptr.hbm [resolvable:$true] %s14
      %s16 = sshll.u32 [#allocation2], 4
      %s17 = int_to_ptr.vmem [resolvable:$true] %s16
      %22 = dma.hbm_to_vmem [thread:$0]  %s15, 14592, %s17, [#allocation3], 128, 128, 8
    $region9: #{siamese_cnn_forward.1} parent=1 // pred_fallthru
      _
    // Predicated region
    $region10: #{siamese_cnn_forward.1} parent=1 // pred_check
      _
    $region11: #{siamese_cnn_forward.1} parent=1 // pred_check_branch
      %24 = sbr.rel (0) target = $region13
    $region12: #{siamese_cnn_forward.1} parent=1 // pred_region
      %26 = dma.done [#allocation3], 14592
    $region13: #{siamese_cnn_forward.1} parent=1 // pred_fallthru
      _
    %v27 = vlaneseq
    %v28 = vand.u32 %v27, 127
    %v29 = vld [vmem:[%s0] sm:$0xff]
    %v30 = vld [vmem:[%s0 + $0x8] sm:$0xff]
    %v31 = vld [vmem:[%s0 + $0x10] sm:$0xff]
    %v32 = vld [vmem:[%s0 + $0x18] sm:$0xff]
    %v33 = vld [vmem:[%s0 + $0x20] sm:$0xff]
    %v34 = vld [vmem:[%s0 + $0x28] sm:$0xff]
    %v35 = vld [vmem:[%s0 + $0x30] sm:$0xff]
    %v36 = vld [vmem:[%s0 + $0x38] sm:$0xff]
    %37 = vset.pattern.permute.xlu0 0
    %38 = vperm.xlu0 %37, %v29
    %v39 = vpop.permute.xlu0 %38
    %40 = vset.pattern.permute.xlu0 0
    %41 = vperm.xlu0 %40, %v30
    %v42 = vpop.permute.xlu0 %41
    %43 = vset.pattern.permute.xlu0 0
    %44 = vperm.xlu0 %43, %v31
    %v45 = vpop.permute.xlu0 %44
    %46 = vset.pattern.permute.xlu0 0
    %47 = vperm.xlu0 %46, %v32
    %v48 = vpop.permute.xlu0 %47
    %49 = vset.pattern.permute.xlu0 0
    %50 = vperm.xlu0 %49, %v33
    %v51 = vpop.permute.xlu0 %50
    %52 = vset.pattern.permute.xlu0 0
    %53 = vperm.xlu0 %52, %v34
    %v54 = vpop.permute.xlu0 %53
    %55 = vset.pattern.permute.xlu0 0
    %56 = vperm.xlu0 %55, %v35
    %v57 = vpop.permute.xlu0 %56
    %58 = vset.pattern.permute.xlu0 0
    %59 = vperm.xlu0 %58, %v36
    %v60 = vpop.permute.xlu0 %59
    %vm61 = vcmp.eq.s32.totalorder %v28, %v39
    %vm62 = vcmp.eq.s32.totalorder %v28, %v42
    %vm63 = vcmp.eq.s32.totalorder %v28, %v45
    %vm64 = vcmp.eq.s32.totalorder %v28, %v48
    %vm65 = vcmp.eq.s32.totalorder %v28, %v51
    %vm66 = vcmp.eq.s32.totalorder %v28, %v54
    %vm67 = vcmp.eq.s32.totalorder %v28, %v57
    %vm68 = vcmp.eq.s32.totalorder %v28, %v60
    %v69 = vsel %vm61, 1, 0
    %v70 = vsel %vm62, 1, 0
    %v71 = vsel %vm63, 1, 0
    %v72 = vsel %vm64, 1, 0
    %v73 = vsel %vm65, 1, 0
    %v74 = vsel %vm66, 1, 0
    %v75 = vsel %vm67, 1, 0
    %v76 = vsel %vm68, 1, 0
    %v77 = vcvt.s32.f32 %v69
    %v78 = vcvt.s32.f32 %v70
    %v79 = vcvt.s32.f32 %v71
    %v80 = vcvt.s32.f32 %v72
    %v81 = vcvt.s32.f32 %v73
    %v82 = vcvt.s32.f32 %v74
    %v83 = vcvt.s32.f32 %v75
    %v84 = vcvt.s32.f32 %v76
    %v85 = vld [vmem:[#allocation2] sm:$0xff]
    %v86 = vld [vmem:[#allocation2 + $0x8] sm:$0xff]
    %v87 = vld [vmem:[#allocation2 + $0x10] sm:$0xff]
    %v88 = vld [vmem:[#allocation2 + $0x18] sm:$0xff]
    %s89 = scalar_lea.vmem %s0, 64
    %v90 = vld [vmem:[%s89] sm:$0xff]
    %v91 = vld [vmem:[%s89 + $0x8] sm:$0xff]
    %v92 = vld [vmem:[%s89 + $0x10] sm:$0xff]
    %v93 = vld [vmem:[%s89 + $0x18] sm:$0xff]
    %v94 = vld [vmem:[%s89 + $0x20] sm:$0xff]
    %v95 = vld [vmem:[%s89 + $0x28] sm:$0xff]
    %v96 = vld [vmem:[%s89 + $0x30] sm:$0xff]
    %v97 = vld [vmem:[%s89 + $0x38] sm:$0xff]
    %98 = vset.pattern.permute.xlu0 0
    %99 = vperm.xlu0 %98, %v90
    %v100 = vpop.permute.xlu0 %99
    %101 = vset.pattern.permute.xlu0 0
    %102 = vperm.xlu0 %101, %v91
    %v103 = vpop.permute.xlu0 %102
    %104 = vset.pattern.permute.xlu0 0
    %105 = vperm.xlu0 %104, %v92
    %v106 = vpop.permute.xlu0 %105
    %107 = vset.pattern.permute.xlu0 0
    %108 = vperm.xlu0 %107, %v93
    %v109 = vpop.permute.xlu0 %108
    %110 = vset.pattern.permute.xlu0 0
    %111 = vperm.xlu0 %110, %v94
    %v112 = vpop.permute.xlu0 %111
    %113 = vset.pattern.permute.xlu0 0
    %114 = vperm.xlu0 %113, %v95
    %v115 = vpop.permute.xlu0 %114
    %116 = vset.pattern.permute.xlu0 0
    %117 = vperm.xlu0 %116, %v96
    %v118 = vpop.permute.xlu0 %117
    %119 = vset.pattern.permute.xlu0 0
    %120 = vperm.xlu0 %119, %v97
    %v121 = vpop.permute.xlu0 %120
    %vm122 = vcmp.eq.s32.totalorder %v28, %v100
    %vm123 = vcmp.eq.s32.totalorder %v28, %v103
    %vm124 = vcmp.eq.s32.totalorder %v28, %v106
    %vm125 = vcmp.eq.s32.totalorder %v28, %v109
    %vm126 = vcmp.eq.s32.totalorder %v28, %v112
    %vm127 = vcmp.eq.s32.totalorder %v28, %v115
    %vm128 = vcmp.eq.s32.totalorder %v28, %v118
    %vm129 = vcmp.eq.s32.totalorder %v28, %v121
    %v130 = vsel %vm122, 1, 0
    %v131 = vsel %vm123, 1, 0
    %v132 = vsel %vm124, 1, 0
    %v133 = vsel %vm125, 1, 0
    %v134 = vsel %vm126, 1, 0
    %v135 = vsel %vm127, 1, 0
    %v136 = vsel %vm128, 1, 0
    %v137 = vsel %vm129, 1, 0
    %v138 = vcvt.s32.f32 %v130
    %v139 = vcvt.s32.f32 %v131
    %v140 = vcvt.s32.f32 %v132
    %v141 = vcvt.s32.f32 %v133
    %v142 = vcvt.s32.f32 %v134
    %v143 = vcvt.s32.f32 %v135
    %v144 = vcvt.s32.f32 %v136
    %v145 = vcvt.s32.f32 %v137
    %v146 = vld [vmem:[#allocation2 + $0x20] sm:$0xff]
    %v147 = vld [vmem:[#allocation2 + $0x28] sm:$0xff]
    %v148 = vld [vmem:[#allocation2 + $0x30] sm:$0xff]
    %v149 = vld [vmem:[#allocation2 + $0x38] sm:$0xff]
    %vm150 = vcmask 261120
    %v152 = vsel %vm150, %v138, 0
    %v155 = vsel %vm150, %v139, 0
    %v158 = vsel %vm150, %v140, 0
    %v161 = vsel %vm150, %v141, 0
    %v164 = vsel %vm150, %v142, 0
    %v167 = vsel %vm150, %v143, 0
    %v170 = vsel %vm150, %v144, 0
    %v173 = vsel %vm150, %v145, 0
    %175 = vmatpush.msra.mxu0 0.0
    %176 = vmatpush.msra.mxu0 0.0
    %177 = vmatpush.msra.mxu0 0.0
    %178 = vmatpush.msra.mxu0 0.0
    %179 = vmatpush.msra.mxu0 0.0
    %180 = vmatpush.msra.mxu0 0.0
    %181 = vmatpush.msra.mxu0 0.0
    %182 = vmatpush.msra.mxu0 0.0
    %183 = vmatpush.msra.mxu0 0.0
    %184 = vmatpush.msra.mxu0 0.0
    %185 = vmatpush.msra.mxu0 0.0
    %186 = vmatpush.msra.mxu0 0.0
    %187 = vmatpush.msra.mxu0 %v149
    %188 = vmatpush.msra.mxu0 %v148
    %189 = vmatpush.msra.mxu0 %v147
    %190 = vmatpush.msra.mxu0 %v146
    %191 = vmatmul.f32.gmra.mxu0 %v152
    %v192 = vpop.f32.mrf.mxu0
    %v193 = vadd.f32 0.0, %v192
    %194 = vmatmul.f32.gmra.mxu0 %v155
    %v195 = vpop.f32.mrf.mxu0
    %v196 = vadd.f32 0.0, %v195
    %197 = vmatmul.f32.gmra.mxu0 %v158
    %v198 = vpop.f32.mrf.mxu0
    %v199 = vadd.f32 0.0, %v198
    %200 = vmatmul.f32.gmra.mxu0 %v161
    %v201 = vpop.f32.mrf.mxu0
    %v202 = vadd.f32 0.0, %v201
    %203 = vmatmul.f32.gmra.mxu0 %v164
    %v204 = vpop.f32.mrf.mxu0
    %v205 = vadd.f32 0.0, %v204
    %206 = vmatmul.f32.gmra.mxu0 %v167
    %v207 = vpop.f32.mrf.mxu0
    %v208 = vadd.f32 0.0, %v207
    %209 = vmatmul.f32.gmra.mxu0 %v170
    %v210 = vpop.f32.mrf.mxu0
    %v211 = vadd.f32 0.0, %v210
    %212 = vmatmul.f32.gmra.mxu0 %v173
    %v213 = vpop.f32.mrf.mxu0
    %v214 = vadd.f32 0.0, %v213
    %215 = vdwg.mxu0
    %v217 = vsel %vm150, %v77, 0
    %v220 = vsel %vm150, %v78, 0
    %v223 = vsel %vm150, %v79, 0
    %v226 = vsel %vm150, %v80, 0
    %v229 = vsel %vm150, %v81, 0
    %v232 = vsel %vm150, %v82, 0
    %v235 = vsel %vm150, %v83, 0
    %v238 = vsel %vm150, %v84, 0
    %240 = vmatpush.msra.mxu0 0.0
    %241 = vmatpush.msra.mxu0 0.0
    %242 = vmatpush.msra.mxu0 0.0
    %243 = vmatpush.msra.mxu0 0.0
    %244 = vmatpush.msra.mxu0 0.0
    %245 = vmatpush.msra.mxu0 0.0
    %246 = vmatpush.msra.mxu0 0.0
    %247 = vmatpush.msra.mxu0 0.0
    %248 = vmatpush.msra.mxu0 0.0
    %249 = vmatpush.msra.mxu0 0.0
    %250 = vmatpush.msra.mxu0 0.0
    %251 = vmatpush.msra.mxu0 0.0
    %252 = vmatpush.msra.mxu0 %v88
    %253 = vmatpush.msra.mxu0 %v87
    %254 = vmatpush.msra.mxu0 %v86
    %255 = vmatpush.msra.mxu0 %v85
    %256 = vmatmul.f32.gmra.mxu0 %v217
    %v257 = vpop.f32.mrf.mxu0
    %v258 = vadd.f32 %v193, %v257
    %259 = vmatmul.f32.gmra.mxu0 %v220
    %v260 = vpop.f32.mrf.mxu0
    %v261 = vadd.f32 %v196, %v260
    %262 = vmatmul.f32.gmra.mxu0 %v223
    %v263 = vpop.f32.mrf.mxu0
    %v264 = vadd.f32 %v199, %v263
    %265 = vmatmul.f32.gmra.mxu0 %v226
    %v266 = vpop.f32.mrf.mxu0
    %v267 = vadd.f32 %v202, %v266
    %268 = vmatmul.f32.gmra.mxu0 %v229
    %v269 = vpop.f32.mrf.mxu0
    %v270 = vadd.f32 %v205, %v269
    %271 = vmatmul.f32.gmra.mxu0 %v232
    %v272 = vpop.f32.mrf.mxu0
    %v273 = vadd.f32 %v208, %v272
    %274 = vmatmul.f32.gmra.mxu0 %v235
    %v275 = vpop.f32.mrf.mxu0
    %v276 = vadd.f32 %v211, %v275
    %277 = vmatmul.f32.gmra.mxu0 %v238
    %v278 = vpop.f32.mrf.mxu0
    %v279 = vadd.f32 %v214, %v278
    %280 = vdwg.mxu0
    %s281 = scalar_lea.vmem %s0, 128
    %v282 = vld [vmem:[%s281] sm:$0xff]
    %v283 = vld [vmem:[%s281 + $0x8] sm:$0xff]
    %v284 = vld [vmem:[%s281 + $0x10] sm:$0xff]
    %v285 = vld [vmem:[%s281 + $0x18] sm:$0xff]
    %v286 = vld [vmem:[%s281 + $0x20] sm:$0xff]
    %v287 = vld [vmem:[%s281 + $0x28] sm:$0xff]
    %v288 = vld [vmem:[%s281 + $0x30] sm:$0xff]
    %v289 = vld [vmem:[%s281 + $0x38] sm:$0xff]
    %290 = vset.pattern.permute.xlu0 0
    %291 = vperm.xlu0 %290, %v282
    %v292 = vpop.permute.xlu0 %291
    %293 = vset.pattern.permute.xlu0 0
    %294 = vperm.xlu0 %293, %v283
    %v295 = vpop.permute.xlu0 %294
    %296 = vset.pattern.permute.xlu0 0
    %297 = vperm.xlu0 %296, %v284
    %v298 = vpop.permute.xlu0 %297
    %299 = vset.pattern.permute.xlu0 0
    %300 = vperm.xlu0 %299, %v285
    %v301 = vpop.permute.xlu0 %300
    %302 = vset.pattern.permute.xlu0 0
    %303 = vperm.xlu0 %302, %v286
    %v304 = vpop.permute.xlu0 %303
    %305 = vset.pattern.permute.xlu0 0
    %306 = vperm.xlu0 %305, %v287
    %v307 = vpop.permute.xlu0 %306
    %308 = vset.pattern.permute.xlu0 0
    %309 = vperm.xlu0 %308, %v288
    %v310 = vpop.permute.xlu0 %309
    %311 = vset.pattern.permute.xlu0 0
    %312 = vperm.xlu0 %311, %v289
    %v313 = vpop.permute.xlu0 %312
    %vm314 = vcmp.eq.s32.totalorder %v28, %v292
    %vm315 = vcmp.eq.s32.totalorder %v28, %v295
    %vm316 = vcmp.eq.s32.totalorder %v28, %v298
    %vm317 = vcmp.eq.s32.totalorder %v28, %v301
    %vm318 = vcmp.eq.s32.totalorder %v28, %v304
    %vm319 = vcmp.eq.s32.totalorder %v28, %v307
    %vm320 = vcmp.eq.s32.totalorder %v28, %v310
    %vm321 = vcmp.eq.s32.totalorder %v28, %v313
    %v322 = vsel %vm314, 1, 0
    %v323 = vsel %vm315, 1, 0
    %v324 = vsel %vm316, 1, 0
    %v325 = vsel %vm317, 1, 0
    %v326 = vsel %vm318, 1, 0
    %v327 = vsel %vm319, 1, 0
    %v328 = vsel %vm320, 1, 0
    %v329 = vsel %vm321, 1, 0
    %v330 = vcvt.s32.f32 %v322
    %v331 = vcvt.s32.f32 %v323
    %v332 = vcvt.s32.f32 %v324
    %v333 = vcvt.s32.f32 %v325
    %v334 = vcvt.s32.f32 %v326
    %v335 = vcvt.s32.f32 %v327
    %v336 = vcvt.s32.f32 %v328
    %v337 = vcvt.s32.f32 %v329
    %v338 = vld [vmem:[#allocation2 + $0x40] sm:$0xff]
    %v339 = vld [vmem:[#allocation2 + $0x48] sm:$0xff]
    %v340 = vld [vmem:[#allocation2 + $0x50] sm:$0xff]
    %v341 = vld [vmem:[#allocation2 + $0x58] sm:$0xff]
    %v343 = vsel %vm150, %v330, 0
    %v346 = vsel %vm150, %v331, 0
    %v349 = vsel %vm150, %v332, 0
    %v352 = vsel %vm150, %v333, 0
    %v355 = vsel %vm150, %v334, 0
    %v358 = vsel %vm150, %v335, 0
    %v361 = vsel %vm150, %v336, 0
    %v364 = vsel %vm150, %v337, 0
    %366 = vmatpush.msra.mxu0 0.0
    %367 = vmatpush.msra.mxu0 0.0
    %368 = vmatpush.msra.mxu0 0.0
    %369 = vmatpush.msra.mxu0 0.0
    %370 = vmatpush.msra.mxu0 0.0
    %371 = vmatpush.msra.mxu0 0.0
    %372 = vmatpush.msra.mxu0 0.0
    %373 = vmatpush.msra.mxu0 0.0
    %374 = vmatpush.msra.mxu0 0.0
    %375 = vmatpush.msra.mxu0 0.0
    %376 = vmatpush.msra.mxu0 0.0
    %377 = vmatpush.msra.mxu0 0.0
    %378 = vmatpush.msra.mxu0 %v341
    %379 = vmatpush.msra.mxu0 %v340
    %380 = vmatpush.msra.mxu0 %v339
    %381 = vmatpush.msra.mxu0 %v338
    %382 = vmatmul.f32.gmra.mxu0 %v343
    %v383 = vpop.f32.mrf.mxu0
    %v384 = vadd.f32 0.0, %v383
    %385 = vmatmul.f32.gmra.mxu0 %v346
    %v386 = vpop.f32.mrf.mxu0
    %v387 = vadd.f32 0.0, %v386
    %388 = vmatmul.f32.gmra.mxu0 %v349
    %v389 = vpop.f32.mrf.mxu0
    %v390 = vadd.f32 0.0, %v389
    %391 = vmatmul.f32.gmra.mxu0 %v352
    %v392 = vpop.f32.mrf.mxu0
    %v393 = vadd.f32 0.0, %v392
    %394 = vmatmul.f32.gmra.mxu0 %v355
    %v395 = vpop.f32.mrf.mxu0
    %v396 = vadd.f32 0.0, %v395
    %397 = vmatmul.f32.gmra.mxu0 %v358
    %v398 = vpop.f32.mrf.mxu0
    %v399 = vadd.f32 0.0, %v398
    %400 = vmatmul.f32.gmra.mxu0 %v361
    %v401 = vpop.f32.mrf.mxu0
    %v402 = vadd.f32 0.0, %v401
    %403 = vmatmul.f32.gmra.mxu0 %v364
    %v404 = vpop.f32.mrf.mxu0
    %v405 = vadd.f32 0.0, %v404
    %406 = vdwg.mxu0
    %v407 = vadd.f32 %v258, %v384
    %v408 = vadd.f32 %v261, %v387
    %v409 = vadd.f32 %v264, %v390
    %v410 = vadd.f32 %v267, %v393
    %v411 = vadd.f32 %v270, %v396
    %v412 = vadd.f32 %v273, %v399
    %v413 = vadd.f32 %v276, %v402
    %v414 = vadd.f32 %v279, %v405
    %v415 = vld [vmem:[#allocation2 + $0x60] sm:$0xff]
    %v416 = vld [vmem:[#allocation2 + $0x68] sm:$0xff]
    %v417 = vadd.f32 %v407, %v415
    %v418 = vadd.f32 %v408, %v416
    %v419 = vadd.f32 %v409, %v415
    %v420 = vadd.f32 %v410, %v416
    %v421 = vadd.f32 %v411, %v415
    %v422 = vadd.f32 %v412, %v416
    %v423 = vadd.f32 %v413, %v415
    %v424 = vadd.f32 %v414, %v416
    %v425 = vmax.f32 %v417, %v418
    %v426 = vrot.slane %v425, 4
    %v427 = vmax.f32 %v425, %v426
    %v428 = vrot.slane %v427, 2
    %v429 = vmax.f32 %v427, %v428
    %v430 = vrot.slane %v429, 1
    %v431 = vmax.f32 %v429, %v430
    %v432 = vmax.f32 %v419, %v420
    %v433 = vrot.slane %v432, 4
    %v434 = vmax.f32 %v432, %v433
    %v435 = vrot.slane %v434, 2
    %v436 = vmax.f32 %v434, %v435
    %v437 = vrot.slane %v436, 1
    %v438 = vmax.f32 %v436, %v437
    %v439 = vmax.f32 %v421, %v422
    %v440 = vrot.slane %v439, 4
    %v441 = vmax.f32 %v439, %v440
    %v442 = vrot.slane %v441, 2
    %v443 = vmax.f32 %v441, %v442
    %v444 = vrot.slane %v443, 1
    %v445 = vmax.f32 %v443, %v444
    %v446 = vmax.f32 %v423, %v424
    %v447 = vrot.slane %v446, 4
    %v448 = vmax.f32 %v446, %v447
    %v449 = vrot.slane %v448, 2
    %v450 = vmax.f32 %v448, %v449
    %v451 = vrot.slane %v450, 1
    %v452 = vmax.f32 %v450, %v451
    %v453 = vld [vmem:[#allocation2 + $0x70] sm:$0x1]
    %v454 = vperm.slane %v453, 0
    %v455 = vadd.f32 %v431, %v454
    %v456 = vadd.f32 %v438, %v454
    %v457 = vadd.f32 %v445, %v454
    %v458 = vadd.f32 %v452, %v454
    %v459 = vmax.f32 %v455, 0.0
    %v460 = vmax.f32 %v456, 0.0
    %v461 = vmax.f32 %v457, 0.0
    %v462 = vmax.f32 %v458, 0.0
    %v463 = vsub.f32 %v459, %v461
    %v464 = vsub.f32 %v460, %v462
    %v465 = vand.u32 2147483647, %v463
    %v466 = vand.u32 2147483647, %v464
    %v467 = vld [vmem:[#allocation2 + $0x78] sm:$0xff]
    %v468 = vld [vmem:[#allocation2 + $0x80] sm:$0xff]
    %v469 = vld [vmem:[#allocation2 + $0x88] sm:$0xff]
    %v470 = vld [vmem:[#allocation2 + $0x90] sm:$0xff]
    %v471 = vld [vmem:[#allocation2 + $0x98] sm:$0xff]
    %v472 = vld [vmem:[#allocation2 + $0xa0] sm:$0xff]
    %v473 = vld [vmem:[#allocation2 + $0xa8] sm:$0xff]
    %v474 = vld [vmem:[#allocation2 + $0xb0] sm:$0xff]
    %v475 = vld [vmem:[#allocation2 + $0xb8] sm:$0xff]
    %v476 = vld [vmem:[#allocation2 + $0xc0] sm:$0xff]
    %v477 = vld [vmem:[#allocation2 + $0xc8] sm:$0xff]
    %v478 = vld [vmem:[#allocation2 + $0xd0] sm:$0xff]
    %v479 = vld [vmem:[#allocation2 + $0xd8] sm:$0xff]
    %v480 = vld [vmem:[#allocation2 + $0xe0] sm:$0xff]
    %v481 = vld [vmem:[#allocation2 + $0xe8] sm:$0xff]
    %v482 = vld [vmem:[#allocation2 + $0xf0] sm:$0xff]
    %v483 = vmul.f32 %v459, %v461
    %v484 = vmul.f32 %v460, %v462
    %v487 = vrot.slane %v484, 7
    %vm488 = vcmask 1041409
    %v489 = vsel %vm488, %v487, %v483
    %491 = vmatpush.msra.mxu0 %v482
    %492 = vmatpush.msra.mxu0 %v481
    %493 = vmatpush.msra.mxu0 %v480
    %494 = vmatpush.msra.mxu0 %v479
    %495 = vmatpush.msra.mxu0 %v478
    %496 = vmatpush.msra.mxu0 %v477
    %497 = vmatpush.msra.mxu0 %v476
    %498 = vmatpush.msra.mxu0 %v475
    %499 = vmatpush.msra.mxu0 %v474
    %500 = vmatpush.msra.mxu0 %v473
    %501 = vmatpush.msra.mxu0 %v472
    %502 = vmatpush.msra.mxu0 %v471
    %503 = vmatpush.msra.mxu0 %v470
    %504 = vmatpush.msra.mxu0 %v469
    %505 = vmatpush.msra.mxu0 %v468
    %506 = vmatpush.msra.mxu0 %v467
    %507 = vmatmul.f32.gmra.mxu0 %v489
    %v508 = vpop.f32.mrf.mxu0
    %v509 = vadd.f32 0.0, %v508
    %510 = vdwg.mxu0
    %v511 = vmul.f32 %v459, %v459
    %v512 = vmul.f32 %v460, %v460
    %v515 = vrot.slane %v512, 7
    %v516 = vsel %vm488, %v515, %v511
    %518 = vmatpush.msra.mxu0 %v482
    %519 = vmatpush.msra.mxu0 %v481
    %520 = vmatpush.msra.mxu0 %v480
    %521 = vmatpush.msra.mxu0 %v479
    %522 = vmatpush.msra.mxu0 %v478
    %523 = vmatpush.msra.mxu0 %v477
    %524 = vmatpush.msra.mxu0 %v476
    %525 = vmatpush.msra.mxu0 %v475
    %526 = vmatpush.msra.mxu0 %v474
    %527 = vmatpush.msra.mxu0 %v473
    %528 = vmatpush.msra.mxu0 %v472
    %529 = vmatpush.msra.mxu0 %v471
    %530 = vmatpush.msra.mxu0 %v470
    %531 = vmatpush.msra.mxu0 %v469
    %532 = vmatpush.msra.mxu0 %v468
    %533 = vmatpush.msra.mxu0 %v467
    %534 = vmatmul.f32.gmra.mxu0 %v516
    %v535 = vpop.f32.mrf.mxu0
    %v536 = vadd.f32 0.0, %v535
    %537 = vdwg.mxu0
    %v538 = vmul.f32 %v461, %v461
    %v539 = vmul.f32 %v462, %v462
    %v542 = vrot.slane %v539, 7
    %v543 = vsel %vm488, %v542, %v538
    %545 = vmatpush.msra.mxu0 %v482
    %546 = vmatpush.msra.mxu0 %v481
    %547 = vmatpush.msra.mxu0 %v480
    %548 = vmatpush.msra.mxu0 %v479
    %549 = vmatpush.msra.mxu0 %v478
    %550 = vmatpush.msra.mxu0 %v477
    %551 = vmatpush.msra.mxu0 %v476
    %552 = vmatpush.msra.mxu0 %v475
    %553 = vmatpush.msra.mxu0 %v474
    %554 = vmatpush.msra.mxu0 %v473
    %555 = vmatpush.msra.mxu0 %v472
    %556 = vmatpush.msra.mxu0 %v471
    %557 = vmatpush.msra.mxu0 %v470
    %558 = vmatpush.msra.mxu0 %v469
    %559 = vmatpush.msra.mxu0 %v468
    %560 = vmatpush.msra.mxu0 %v467
    %561 = vmatmul.f32.gmra.mxu0 %v543
    %v562 = vpop.f32.mrf.mxu0
    %v563 = vadd.f32 0.0, %v562
    %564 = vdwg.mxu0
    %v565 = vmul.f32 %v463, %v463
    %v566 = vmul.f32 %v464, %v464
    %v569 = vrot.slane %v566, 7
    %v570 = vsel %vm488, %v569, %v565
    %572 = vmatpush.msra.mxu0 %v482
    %573 = vmatpush.msra.mxu0 %v481
    %574 = vmatpush.msra.mxu0 %v480
    %575 = vmatpush.msra.mxu0 %v479
    %576 = vmatpush.msra.mxu0 %v478
    %577 = vmatpush.msra.mxu0 %v477
    %578 = vmatpush.msra.mxu0 %v476
    %579 = vmatpush.msra.mxu0 %v475
    %580 = vmatpush.msra.mxu0 %v474
    %581 = vmatpush.msra.mxu0 %v473
    %582 = vmatpush.msra.mxu0 %v472
    %583 = vmatpush.msra.mxu0 %v471
    %584 = vmatpush.msra.mxu0 %v470
    %585 = vmatpush.msra.mxu0 %v469
    %586 = vmatpush.msra.mxu0 %v468
    %587 = vmatpush.msra.mxu0 %v467
    %588 = vmatmul.f32.gmra.mxu0 %v570
    %v589 = vpop.f32.mrf.mxu0
    %v590 = vadd.f32 0.0, %v589
    %591 = vdwg.mxu0
    %v592 = vmul.f32 %v536, %v563
    %v593 = vmax.f32 %v592, 1e-16
    %v594 = vrsqrt.pop %v593
    %v595 = vmul.f32 %v594, %v593
    %v596 = vmul.f32 %v595, %v594
    %v597 = vmul.f32 0.5, %v596
    %v598 = vsub.f32 1.5, %v597
    %v599 = vmul.f32 %v594, %v598
    %vm600 = vweird.f32 %v593
    %vm601 = vweird.f32 %v594
    %vm602 = vmor %vm600, %vm601
    %v603 = vsel %vm602, %v594, %v599
    %v604 = vmul.f32 %v509, %v603
    %v605 = vrsqrt.pop %v590
    %v606 = vmul.f32 %v605, %v590
    %v607 = vmul.f32 %v606, %v605
    %v608 = vmul.f32 0.5, %v607
    %v609 = vsub.f32 1.5, %v608
    %v610 = vmul.f32 %v605, %v609
    %v611 = vmul.f32 %v590, %v610
    %vm612 = vcmp.eq.f32.partialorder %v590, inf
    %v613 = vsel %vm612, %v590, %v611
    %vm614 = vcmp.eq.f32.partialorder %v590, 0.0
    %v615 = vand.u32 %v590, 2147483648
    %v616 = vsel %vm614, %v615, %v613
    %v617 = vld [vmem:[#allocation2 + $0xf8] sm:$0xff]
    %v618 = vld [vmem:[#allocation2 + $0x100] sm:$0xff]
    %v619 = vld [vmem:[#allocation2 + $0x108] sm:$0xff]
    %v620 = vld [vmem:[#allocation2 + $0x110] sm:$0xff]
    %v621 = vld [vmem:[#allocation2 + $0x118] sm:$0xff]
    %v622 = vld [vmem:[#allocation2 + $0x120] sm:$0xff]
    %v623 = vld [vmem:[#allocation2 + $0x128] sm:$0xff]
    %v624 = vld [vmem:[#allocation2 + $0x130] sm:$0xff]
    %v625 = vld [vmem:[#allocation2 + $0x138] sm:$0xff]
    %v626 = vld [vmem:[#allocation2 + $0x140] sm:$0xff]
    %v627 = vld [vmem:[#allocation2 + $0x148] sm:$0xff]
    %v628 = vld [vmem:[#allocation2 + $0x150] sm:$0xff]
    %v629 = vld [vmem:[#allocation2 + $0x158] sm:$0xff]
    %v630 = vld [vmem:[#allocation2 + $0x160] sm:$0xff]
    %v631 = vld [vmem:[#allocation2 + $0x168] sm:$0xff]
    %v632 = vld [vmem:[#allocation2 + $0x170] sm:$0xff]
    %v633 = vld [vmem:[#allocation2 + $0x178] sm:$0xff]
    %v634 = vld [vmem:[#allocation2 + $0x180] sm:$0xff]
    %v635 = vld [vmem:[#allocation2 + $0x188] sm:$0xff]
    %v636 = vld [vmem:[#allocation2 + $0x190] sm:$0xff]
    %v637 = vld [vmem:[#allocation2 + $0x198] sm:$0xff]
    %v638 = vld [vmem:[#allocation2 + $0x1a0] sm:$0xff]
    %v639 = vld [vmem:[#allocation2 + $0x1a8] sm:$0xff]
    %v640 = vld [vmem:[#allocation2 + $0x1b0] sm:$0xff]
    %v641 = vld [vmem:[#allocation2 + $0x1b8] sm:$0xff]
    %v642 = vld [vmem:[#allocation2 + $0x1c0] sm:$0xff]
    %v643 = vld [vmem:[#allocation2 + $0x1c8] sm:$0xff]
    %v644 = vld [vmem:[#allocation2 + $0x1d0] sm:$0xff]
    %v645 = vld [vmem:[#allocation2 + $0x1d8] sm:$0xff]
    %v646 = vld [vmem:[#allocation2 + $0x1e0] sm:$0xff]
    %v647 = vld [vmem:[#allocation2 + $0x1e8] sm:$0xff]
    %v648 = vld [vmem:[#allocation2 + $0x1f0] sm:$0xff]
    %649 = vmatpush.msra.mxu0 %v648
    %650 = vmatpush.msra.mxu0 %v647
    %651 = vmatpush.msra.mxu0 %v646
    %652 = vmatpush.msra.mxu0 %v645
    %653 = vmatpush.msra.mxu0 %v644
    %654 = vmatpush.msra.mxu0 %v643
    %655 = vmatpush.msra.mxu0 %v642
    %656 = vmatpush.msra.mxu0 %v641
    %657 = vmatpush.msra.mxu0 %v640
    %658 = vmatpush.msra.mxu0 %v639
    %659 = vmatpush.msra.mxu0 %v638
    %660 = vmatpush.msra.mxu0 %v637
    %661 = vmatpush.msra.mxu0 %v636
    %662 = vmatpush.msra.mxu0 %v635
    %663 = vmatpush.msra.mxu0 %v634
    %664 = vmatpush.msra.mxu0 %v633
    %665 = vmatmul.f32.gmra.mxu0 %v604
    %v666 = vpop.f32.mrf.mxu0
    %v667 = vadd.f32 0.0, %v666
    %668 = vdwg.mxu0
    %v671 = vrot.slane %v466, 7
    %v672 = vsel %vm488, %v671, %v465
    %674 = vmatpush.msra.mxu0 %v632
    %675 = vmatpush.msra.mxu0 %v631
    %676 = vmatpush.msra.mxu0 %v630
    %677 = vmatpush.msra.mxu0 %v629
    %678 = vmatpush.msra.mxu0 %v628
    %679 = vmatpush.msra.mxu0 %v627
    %680 = vmatpush.msra.mxu0 %v626
    %681 = vmatpush.msra.mxu0 %v625
    %682 = vmatpush.msra.mxu0 %v624
    %683 = vmatpush.msra.mxu0 %v623
    %684 = vmatpush.msra.mxu0 %v622
    %685 = vmatpush.msra.mxu0 %v621
    %686 = vmatpush.msra.mxu0 %v620
    %687 = vmatpush.msra.mxu0 %v619
    %688 = vmatpush.msra.mxu0 %v618
    %689 = vmatpush.msra.mxu0 %v617
    %690 = vmatmul.f32.gmra.mxu0 %v672
    %v691 = vpop.f32.mrf.mxu0
    %v692 = vadd.f32 %v667, %v691
    %693 = vdwg.mxu0
    %v694 = vld [vmem:[#allocation2 + $0x1f8] sm:$0xff]
    %v695 = vld [vmem:[#allocation2 + $0x200] sm:$0xff]
    %v696 = vld [vmem:[#allocation2 + $0x208] sm:$0xff]
    %v697 = vld [vmem:[#allocation2 + $0x210] sm:$0xff]
    %v698 = vld [vmem:[#allocation2 + $0x218] sm:$0xff]
    %v699 = vld [vmem:[#allocation2 + $0x220] sm:$0xff]
    %v700 = vld [vmem:[#allocation2 + $0x228] sm:$0xff]
    %v701 = vld [vmem:[#allocation2 + $0x230] sm:$0xff]
    %v702 = vld [vmem:[#allocation2 + $0x238] sm:$0xff]
    %v703 = vld [vmem:[#allocation2 + $0x240] sm:$0xff]
    %v704 = vld [vmem:[#allocation2 + $0x248] sm:$0xff]
    %v705 = vld [vmem:[#allocation2 + $0x250] sm:$0xff]
    %v706 = vld [vmem:[#allocation2 + $0x258] sm:$0xff]
    %v707 = vld [vmem:[#allocation2 + $0x260] sm:$0xff]
    %v708 = vld [vmem:[#allocation2 + $0x268] sm:$0xff]
    %v709 = vld [vmem:[#allocation2 + $0x270] sm:$0xff]
    %710 = vmatpush.msra.mxu0 %v709
    %711 = vmatpush.msra.mxu0 %v708
    %712 = vmatpush.msra.mxu0 %v707
    %713 = vmatpush.msra.mxu0 %v706
    %714 = vmatpush.msra.mxu0 %v705
    %715 = vmatpush.msra.mxu0 %v704
    %716 = vmatpush.msra.mxu0 %v703
    %717 = vmatpush.msra.mxu0 %v702
    %718 = vmatpush.msra.mxu0 %v701
    %719 = vmatpush.msra.mxu0 %v700
    %720 = vmatpush.msra.mxu0 %v699
    %721 = vmatpush.msra.mxu0 %v698
    %722 = vmatpush.msra.mxu0 %v697
    %723 = vmatpush.msra.mxu0 %v696
    %724 = vmatpush.msra.mxu0 %v695
    %725 = vmatpush.msra.mxu0 %v694
    %726 = vmatmul.f32.gmra.mxu0 %v616
    %v727 = vpop.f32.mrf.mxu0
    %v728 = vadd.f32 0.0, %v727
    %729 = vdwg.mxu0
    %v730 = vadd.f32 %v692, %v728
    %v731 = vld [vmem:[#allocation2 + $0x278] sm:$0x1]
    %v732 = vperm.slane %v731, 0
    %v733 = vadd.f32 %v730, %v732
    %v734 = vmax.f32 %v733, 0.0
    %v735 = vld [vmem:[#allocation2 + $0x280] sm:$0xff]
    %v736 = vld [vmem:[#allocation2 + $0x288] sm:$0xff]
    %v737 = vld [vmem:[#allocation2 + $0x290] sm:$0xff]
    %v738 = vld [vmem:[#allocation2 + $0x298] sm:$0xff]
    %v739 = vld [vmem:[#allocation2 + $0x2a0] sm:$0xff]
    %v740 = vld [vmem:[#allocation2 + $0x2a8] sm:$0xff]
    %v741 = vld [vmem:[#allocation2 + $0x2b0] sm:$0xff]
    %v742 = vld [vmem:[#allocation2 + $0x2b8] sm:$0xff]
    %v743 = vld [vmem:[#allocation2 + $0x2c0] sm:$0xff]
    %v744 = vld [vmem:[#allocation2 + $0x2c8] sm:$0xff]
    %v745 = vld [vmem:[#allocation2 + $0x2d0] sm:$0xff]
    %v746 = vld [vmem:[#allocation2 + $0x2d8] sm:$0xff]
    %v747 = vld [vmem:[#allocation2 + $0x2e0] sm:$0xff]
    %v748 = vld [vmem:[#allocation2 + $0x2e8] sm:$0xff]
    %v749 = vld [vmem:[#allocation2 + $0x2f0] sm:$0xff]
    %v750 = vld [vmem:[#allocation2 + $0x2f8] sm:$0xff]
    %v751 = vld [vmem:[#allocation2 + $0x300] sm:$0x1]
    %v752 = vperm.slane %v751, 0
    %753 = vmatpush.msra.mxu0 %v750
    %754 = vmatpush.msra.mxu0 %v749
    %755 = vmatpush.msra.mxu0 %v748
    %756 = vmatpush.msra.mxu0 %v747
    %757 = vmatpush.msra.mxu0 %v746
    %758 = vmatpush.msra.mxu0 %v745
    %759 = vmatpush.msra.mxu0 %v744
    %760 = vmatpush.msra.mxu0 %v743
    %761 = vmatpush.msra.mxu0 %v742
    %762 = vmatpush.msra.mxu0 %v741
    %763 = vmatpush.msra.mxu0 %v740
    %764 = vmatpush.msra.mxu0 %v739
    %765 = vmatpush.msra.mxu0 %v738
    %766 = vmatpush.msra.mxu0 %v737
    %767 = vmatpush.msra.mxu0 %v736
    %768 = vmatpush.msra.mxu0 %v735
    %769 = vmatmul.f32.gmra.mxu0 %v734
    %v770 = vpop.f32.mrf.mxu0
    %v771 = vadd.f32 %v752, %v770
    %772 = vdwg.mxu0
    %v773 = vmax.f32 %v771, 0.0
    %v774 = vld [vmem:[#allocation2 + $0x308] sm:$0xff]
    %v775 = vld [vmem:[#allocation2 + $0x310] sm:$0xff]
    %v776 = vld [vmem:[#allocation2 + $0x318] sm:$0xff]
    %v777 = vld [vmem:[#allocation2 + $0x320] sm:$0xff]
    %v778 = vld [vmem:[#allocation2 + $0x328] sm:$0xff]
    %v779 = vld [vmem:[#allocation2 + $0x330] sm:$0xff]
    %v780 = vld [vmem:[#allocation2 + $0x338] sm:$0xff]
    %v781 = vld [vmem:[#allocation2 + $0x340] sm:$0xff]
    %v782 = vld [vmem:[#allocation2 + $0x348] sm:$0xff]
    %v783 = vld [vmem:[#allocation2 + $0x350] sm:$0xff]
    %v784 = vld [vmem:[#allocation2 + $0x358] sm:$0xff]
    %v785 = vld [vmem:[#allocation2 + $0x360] sm:$0xff]
    %v786 = vld [vmem:[#allocation2 + $0x368] sm:$0xff]
    %v787 = vld [vmem:[#allocation2 + $0x370] sm:$0xff]
    %v788 = vld [vmem:[#allocation2 + $0x378] sm:$0xff]
    %v789 = vld [vmem:[#allocation2 + $0x380] sm:$0xff]
    %v790 = vld [vmem:[#allocation2 + $0x388] sm:$0x1]
    %v791 = vperm.slane %v790, 0
    %792 = vmatpush.msra.mxu0 %v789
    %793 = vmatpush.msra.mxu0 %v788
    %794 = vmatpush.msra.mxu0 %v787
    %795 = vmatpush.msra.mxu0 %v786
    %796 = vmatpush.msra.mxu0 %v785
    %797 = vmatpush.msra.mxu0 %v784
    %798 = vmatpush.msra.mxu0 %v783
    %799 = vmatpush.msra.mxu0 %v782
    %800 = vmatpush.msra.mxu0 %v781
    %801 = vmatpush.msra.mxu0 %v780
    %802 = vmatpush.msra.mxu0 %v779
    %803 = vmatpush.msra.mxu0 %v778
    %804 = vmatpush.msra.mxu0 %v777
    %805 = vmatpush.msra.mxu0 %v776
    %806 = vmatpush.msra.mxu0 %v775
    %807 = vmatpush.msra.mxu0 %v774
    %808 = vmatmul.f32.gmra.mxu0 %v773
    %v809 = vpop.f32.mrf.mxu0
    %v810 = vadd.f32 %v791, %v809
    %811 = vdwg.mxu0
    %vm812 = vcmask 17408
    %v813 = vsel %vm812, %v810, -inf
    %814 = vmax.xlane.f32.xlu0 %v813
    %v815 = vpop.xlane.xlu0 %814
    %v816 = vsub.f32 %v810, %v815
    %v817 = vmul.f32 %v816, 1.442695
    %v818 = vpow.pop %v817
    %v819 = vsel %vm812, %v818, 0.0
    %820 = vadd.xlane.f32.xlu0 %v819
    %v821 = vpop.xlane.xlu0 %820
    %v822 = vrcp.pop %v821
    %v823 = vmul.f32 %v821, %v822
    %v824 = vsub.f32 2.0, %v823
    %v825 = vmul.f32 %v822, %v824
    %v826 = vmul.f32 %v818, %v825
    %827 = vst [vmem:[%s2] sm:$0x3] 0.0
    %828 = vst.msk [vmem:[%s2] sm:$0x3] %vm812, %v810
    %830 = vrot.lane.b32.xlu0 %v826, 3
    %v831 = vpop.permute.xlu0 %830
    %vm833 = vcmask 42008
    %834 = vst.msk [vmem:[%s2] sm:$0x3] %vm833, %v831
    // Predicated region
    $region14: #{siamese_cnn_forward.1} parent=1 // pred_check
      _
    $region15: #{siamese_cnn_forward.1} parent=1 // pred_check_branch
      %836 = sbr.rel (0) target = $region17
    $region16: #{siamese_cnn_forward.1} parent=1 // pred_region
      _
    $region17: #{siamese_cnn_forward.1} parent=1 // pred_fallthru
      _
    // Predicated region
    $region18: #{siamese_cnn_forward.1} parent=1 // pred_check
      _
    $region19: #{siamese_cnn_forward.1} parent=1 // pred_check_branch
      %838 = sbr.rel (0) target = $region21
    $region20: #{siamese_cnn_forward.1} parent=1 // pred_region
      _
    $region21: #{siamese_cnn_forward.1} parent=1 // pred_fallthru
      _
    %839 = vsyncpa [#allocation3], 1

</llo_original>
